<compile_context>
chip_gen: v5e
topology: v5e:2x2
jax: 0.10.0
libtpu: 0.0.40
codegen_flags: <defaults>
</compile_context>

<pallas_src>
import jax
import jax.numpy as jnp
from jax.experimental import pallas as pl
from jax.experimental.pallas import tpu as pltpu

n_hidden = 128
n_joints = 7
n_lidars = 9
_N_HEAD = 2 * n_lidars      # fused mu|logvar output rows
_LANE = 128                 # TPU lane width
_TB_CAP = 1024              # max batch (lane) tile


def _round_up(x, m):
    return ((x + m - 1) // m) * m


def _mlp_kernel(x_ref, w1_ref, b1_ref, w2_ref, b2_ref, wh_ref, bh_ref, out_ref):
    # Batch is the lane dimension: every load/store is lane-dense, MXU N = TB.
    x = x_ref[...]                                                  # (n_joints, TB)
    h1 = jnp.tanh(
        jnp.dot(w1_ref[...], x, preferred_element_type=jnp.float32) + b1_ref[...]
    )                                                               # (n_hidden, TB)
    h2 = jnp.tanh(
        jnp.dot(w2_ref[...], h1, preferred_element_type=jnp.float32) + b2_ref[...]
    )                                                               # (n_hidden, TB)
    out_ref[...] = (
        jnp.dot(wh_ref[...], h2, preferred_element_type=jnp.float32) + bh_ref[...]
    ).astype(out_ref.dtype)                                         # (_N_HEAD, TB)


def prepare_params(params):
    """One-time parameter prep (hoisted out of the per-call path).

    params are PyTorch-Linear layout: weight (out_features, in_features),
    bias (out_features,).  Fuses the mu/logvar heads and shapes biases as
    column vectors so they broadcast over the lane (batch) dimension.
    """
    w1, b1, w2, b2, wmu, bmu, wlv, blv = params
    wh = jnp.concatenate([wmu, wlv], axis=0)            # (2*n_lidars, n_hidden)
    bh = jnp.concatenate([bmu, blv], axis=0)            # (2*n_lidars,)
    return (
        w1, b1.reshape(n_hidden, 1),
        w2, b2.reshape(n_hidden, 1),
        wh, bh.reshape(_N_HEAD, 1),
    )


@jax.jit
def normal_mlp_forward(x, prep):
    """x: (B, n_joints) f32. prep: output of prepare_params.
    Returns (mu, logvar), each (B, n_lidars) f32."""
    w1, b1, w2, b2, wh, bh = prep
    B = x.shape[0]
    xt = x.T                                             # (n_joints, B): batch in lanes

    # Lane tile: multiple of 128; aim for >= 2 grid steps (v7x megacore) when
    # B allows it, capped so per-step working set stays small.
    TB = min(_TB_CAP, _round_up(pl.cdiv(B, 2), _LANE))
    grid_b = pl.cdiv(B, TB)      # last block may be partial; OOB writes are masked.

    flops = 2 * grid_b * TB * (
        n_joints * n_hidden + n_hidden * n_hidden + n_hidden * _N_HEAD
    )
    transcendentals = 2 * grid_b * TB * n_hidden
    bytes_accessed = 4 * (
        B * n_joints                          # x
        + n_joints * n_hidden + n_hidden      # fc1
        + n_hidden * n_hidden + n_hidden      # fc2
        + n_hidden * _N_HEAD + _N_HEAD        # fused head
        + B * _N_HEAD                         # output
    )

    out = pl.pallas_call(
        _mlp_kernel,
        out_shape=jax.ShapeDtypeStruct((_N_HEAD, B), jnp.float32),
        grid=(grid_b,),
        in_specs=[
            pl.BlockSpec((n_joints, TB), lambda i: (0, i)),          # x^T: lane-tiled
            pl.BlockSpec((n_hidden, n_joints), lambda i: (0, 0)),    # w1: resident
            pl.BlockSpec((n_hidden, 1), lambda i: (0, 0)),           # b1
            pl.BlockSpec((n_hidden, n_hidden), lambda i: (0, 0)),    # w2
            pl.BlockSpec((n_hidden, 1), lambda i: (0, 0)),           # b2
            pl.BlockSpec((_N_HEAD, n_hidden), lambda i: (0, 0)),     # fused head W
            pl.BlockSpec((_N_HEAD, 1), lambda i: (0, 0)),            # fused head b
        ],
        out_specs=pl.BlockSpec((_N_HEAD, TB), lambda i: (0, i)),
        compiler_params=pltpu.CompilerParams(
            dimension_semantics=("parallel",),
        ),
        cost_estimate=pl.CostEstimate(
            flops=flops,
            transcendentals=transcendentals,
            bytes_accessed=bytes_accessed,
        ),
    )(xt, w1, b1, w2, b2, wh, bh)

    mu = out[:n_lidars, :].T                             # (B, n_lidars)
    logvar = out[n_lidars:, :].T                         # (B, n_lidars)
    return mu, logvar


def init_params(key):
    """PyTorch-Linear-style init: U(-1/sqrt(fan_in), 1/sqrt(fan_in)),
    weight shape (out_features, in_features), bias shape (out_features,)."""
    def linear(key, fan_in, fan_out):
        kw, kb = jax.random.split(key)
        bound = 1.0 / jnp.sqrt(jnp.float32(fan_in))
        w = jax.random.uniform(kw, (fan_out, fan_in), jnp.float32, -bound, bound)
        b = jax.random.uniform(kb, (fan_out,), jnp.float32, -bound, bound)
        return w, b

    k1, k2, k3, k4 = jax.random.split(key, 4)
    w1, b1 = linear(k1, n_joints, n_hidden)
    w2, b2 = linear(k2, n_hidden, n_hidden)
    wmu, bmu = linear(k3, n_hidden, n_lidars)
    wlv, blv = linear(k4, n_hidden, n_lidars)
    return (w1, b1, w2, b2, wmu, bmu, wlv, blv)


def reference_forward(x, params):
    w1, b1, w2, b2, wmu, bmu, wlv, blv = params
    h1 = jnp.tanh(x @ w1.T + b1)
    h2 = jnp.tanh(h1 @ w2.T + b2)
    return h2 @ wmu.T + bmu, h2 @ wlv.T + blv


if __name__ == "__main__":
    key = jax.random.PRNGKey(0)
    kx, kp = jax.random.split(key)
    params = init_params(kp)
    prep = prepare_params(params)

    # Small batch (single partial tile; OOB lanes masked on write).
    B = 8
    x = jax.random.normal(kx, (B, n_joints), dtype=jnp.float32)
    mu, logvar = normal_mlp_forward(x, prep)
    jax.block_until_ready((mu, logvar))
    mu_ref, lv_ref = reference_forward(x, params)
    assert mu.shape == (B, n_lidars) and logvar.shape == (B, n_lidars)
    assert jnp.allclose(mu, mu_ref, atol=1e-5), "mu mismatch vs reference (B=8)"
    assert jnp.allclose(logvar, lv_ref, atol=1e-5), "logvar mismatch vs reference (B=8)"

    # Ragged batch: >= 2 grid steps (exercises pipelining / megacore sharding)
    # with a partial final block — no jnp.pad anywhere.
    B2 = 1037
    x2 = jax.random.normal(jax.random.PRNGKey(1), (B2, n_joints), dtype=jnp.float32)
    mu2, lv2 = normal_mlp_forward(x2, prep)
    jax.block_until_ready((mu2, lv2))
    mu2_ref, lv2_ref = reference_forward(x2, params)
    assert jnp.allclose(mu2, mu2_ref, atol=1e-5), "mu mismatch vs reference (B=1037)"
    assert jnp.allclose(lv2, lv2_ref, atol=1e-5), "logvar mismatch vs reference (B=1037)"

    print("KERNEL_OK")
</pallas_src>

<mosaic_0001>
module attributes {stable_mosaic.version = 11 : i64} {
  func.func @_mlp_kernel(%arg0: i32, %arg1: memref<7x128xf32, #tpu.memory_space<vmem>>, %arg2: memref<128x7xf32, #tpu.memory_space<vmem>>, %arg3: memref<128x1xf32, #tpu.memory_space<vmem>>, %arg4: memref<128x128xf32, #tpu.memory_space<vmem>>, %arg5: memref<128x1xf32, #tpu.memory_space<vmem>>, %arg6: memref<18x128xf32, #tpu.memory_space<vmem>>, %arg7: memref<18x1xf32, #tpu.memory_space<vmem>>, %arg8: memref<18x128xf32, #tpu.memory_space<vmem>>) attributes {dimension_semantics = [#tpu.dimension_semantics<parallel>], iteration_bounds = array<i64: 1>, scalar_prefetch = 0 : i64, scratch_operands = 0 : i64, tpu.core_type = #tpu.core_type<tc>, window_params = [{transform_indices = @transform_0, window_bounds = array<i64: 7, 128>}, {pipeline_mode = #tpu.pipeline_mode<synchronous>, transform_indices = @transform_1, window_bounds = array<i64: 128, 7>}, {pipeline_mode = #tpu.pipeline_mode<synchronous>, transform_indices = @transform_2, window_bounds = array<i64: 128, 1>}, {pipeline_mode = #tpu.pipeline_mode<synchronous>, transform_indices = @transform_3, window_bounds = array<i64: 128, 128>}, {pipeline_mode = #tpu.pipeline_mode<synchronous>, transform_indices = @transform_4, window_bounds = array<i64: 128, 1>}, {pipeline_mode = #tpu.pipeline_mode<synchronous>, transform_indices = @transform_5, window_bounds = array<i64: 18, 128>}, {pipeline_mode = #tpu.pipeline_mode<synchronous>, transform_indices = @transform_6, window_bounds = array<i64: 18, 1>}, {transform_indices = @transform_7, window_bounds = array<i64: 18, 128>}]} {
    %c0 = arith.constant 0 : index
    %c0_0 = arith.constant 0 : index
    %0 = vector.load %arg1[%c0, %c0_0] : memref<7x128xf32, #tpu.memory_space<vmem>>, vector<7x128xf32>
    %c0_1 = arith.constant 0 : index
    %c0_2 = arith.constant 0 : index
    %1 = vector.load %arg2[%c0_1, %c0_2] : memref<128x7xf32, #tpu.memory_space<vmem>>, vector<128x7xf32>
    %cst = arith.constant dense<0.000000e+00> : vector<128x128xf32>
    %2 = tpu.matmul %1, %0, %cst {dimension_numbers = #tpu.dot_dimension_numbers<[1], [0], [0], [1], [0, 0, 1, 1], [], []>} : vector<128x7xf32>, vector<7x128xf32>, vector<128x128xf32> -> vector<128x128xf32>
    %c0_3 = arith.constant 0 : index
    %c0_4 = arith.constant 0 : index
    %3 = vector.load %arg3[%c0_3, %c0_4] : memref<128x1xf32, #tpu.memory_space<vmem>>, vector<128x1xf32>
    %4 = vector.broadcast %3 : vector<128x1xf32> to vector<128x128xf32>
    %5 = arith.addf %2, %4 : vector<128x128xf32>
    %6 = math.tanh %5 : vector<128x128xf32>
    %c0_5 = arith.constant 0 : index
    %c0_6 = arith.constant 0 : index
    %7 = vector.load %arg4[%c0_5, %c0_6] : memref<128x128xf32, #tpu.memory_space<vmem>>, vector<128x128xf32>
    %cst_7 = arith.constant dense<0.000000e+00> : vector<128x128xf32>
    %8 = tpu.matmul %7, %6, %cst_7 {dimension_numbers = #tpu.dot_dimension_numbers<[1], [0], [0], [1], [0, 0, 1, 1], [], []>} : vector<128x128xf32>, vector<128x128xf32>, vector<128x128xf32> -> vector<128x128xf32>
    %c0_8 = arith.constant 0 : index
    %c0_9 = arith.constant 0 : index
    %9 = vector.load %arg5[%c0_8, %c0_9] : memref<128x1xf32, #tpu.memory_space<vmem>>, vector<128x1xf32>
    %10 = vector.broadcast %9 : vector<128x1xf32> to vector<128x128xf32>
    %11 = arith.addf %8, %10 : vector<128x128xf32>
    %12 = math.tanh %11 : vector<128x128xf32>
    %c0_10 = arith.constant 0 : index
    %c0_11 = arith.constant 0 : index
    %13 = vector.load %arg6[%c0_10, %c0_11] : memref<18x128xf32, #tpu.memory_space<vmem>>, vector<18x128xf32>
    %cst_12 = arith.constant dense<0.000000e+00> : vector<18x128xf32>
    %14 = tpu.matmul %13, %12, %cst_12 {dimension_numbers = #tpu.dot_dimension_numbers<[1], [0], [0], [1], [0, 0, 1, 1], [], []>} : vector<18x128xf32>, vector<128x128xf32>, vector<18x128xf32> -> vector<18x128xf32>
    %c0_13 = arith.constant 0 : index
    %c0_14 = arith.constant 0 : index
    %15 = vector.load %arg7[%c0_13, %c0_14] : memref<18x1xf32, #tpu.memory_space<vmem>>, vector<18x1xf32>
    %16 = vector.broadcast %15 : vector<18x1xf32> to vector<18x128xf32>
    %17 = arith.addf %14, %16 : vector<18x128xf32>
    %c0_15 = arith.constant 0 : index
    %c0_16 = arith.constant 0 : index
    %18 = vector.load %arg8[%c0_15, %c0_16] : memref<18x128xf32, #tpu.memory_space<vmem>>, vector<18x128xf32>
    tpu.vector_store %arg8[%c0_15, %c0_16], %17 {strides = array<i32>} : memref<18x128xf32, #tpu.memory_space<vmem>>, vector<18x128xf32>,
    return
  }
  func.func @transform_0(%arg0: i32) -> (i32, i32) {
    %c0_i32 = arith.constant 0 : i32
    %c0_i32_0 = arith.constant 0 : i32
    return %c0_i32, %arg0 : i32, i32
  }
  func.func @transform_1(%arg0: i32) -> (i32, i32) {
    %c0_i32 = arith.constant 0 : i32
    %c0_i32_0 = arith.constant 0 : i32
    %c0_i32_1 = arith.constant 0 : i32
    return %c0_i32, %c0_i32_0 : i32, i32
  }
  func.func @transform_2(%arg0: i32) -> (i32, i32) {
    %c0_i32 = arith.constant 0 : i32
    %c0_i32_0 = arith.constant 0 : i32
    %c0_i32_1 = arith.constant 0 : i32
    return %c0_i32, %c0_i32_0 : i32, i32
  }
  func.func @transform_3(%arg0: i32) -> (i32, i32) {
    %c0_i32 = arith.constant 0 : i32
    %c0_i32_0 = arith.constant 0 : i32
    %c0_i32_1 = arith.constant 0 : i32
    return %c0_i32, %c0_i32_0 : i32, i32
  }
  func.func @transform_4(%arg0: i32) -> (i32, i32) {
    %c0_i32 = arith.constant 0 : i32
    %c0_i32_0 = arith.constant 0 : i32
    %c0_i32_1 = arith.constant 0 : i32
    return %c0_i32, %c0_i32_0 : i32, i32
  }
  func.func @transform_5(%arg0: i32) -> (i32, i32) {
    %c0_i32 = arith.constant 0 : i32
    %c0_i32_0 = arith.constant 0 : i32
    %c0_i32_1 = arith.constant 0 : i32
    return %c0_i32, %c0_i32_0 : i32, i32
  }
  func.func @transform_6(%arg0: i32) -> (i32, i32) {
    %c0_i32 = arith.constant 0 : i32
    %c0_i32_0 = arith.constant 0 : i32
    %c0_i32_1 = arith.constant 0 : i32
    return %c0_i32, %c0_i32_0 : i32, i32
  }
  func.func @transform_7(%arg0: i32) -> (i32, i32) {
    %c0_i32 = arith.constant 0 : i32
    %c0_i32_0 = arith.constant 0 : i32
    return %c0_i32, %arg0 : i32, i32
  }
}

</mosaic_0001>

<llo_original>
// kernel: normal_mlp_forward.1
$region0: #{normal_mlp_forward.1}
  #allocation0 [shape = 'u32[]', space=smem, size = 0x4, offset = 0x4, fixed_abs, tag = 'smem constant byte address 0x4 - core index']
  #allocation1 [shape = 'u32[72,128]{1,0:T(1,128)}', space=vmem, size = 0x9000, scoped, tag = 'internal scratch']
  %s0 = inlined_call_operand.vmem [shape: f32[7,8], index: 0, kind: input, shape index: {}]
  %s1 = inlined_call_operand.vmem [shape: f32[128,7], index: 1, kind: input, shape index: {}]
  %s2 = inlined_call_operand.vmem [shape: f32[128,1], index: 2, kind: input, shape index: {}]
  %s3 = inlined_call_operand.vmem [shape: f32[128,128], index: 3, kind: input, shape index: {}]
  %s4 = inlined_call_operand.vmem [shape: f32[128,1], index: 4, kind: input, shape index: {}]
  %s5 = inlined_call_operand.vmem [shape: f32[18,128], index: 5, kind: input, shape index: {}]
  %s6 = inlined_call_operand.vmem [shape: f32[18,1], index: 6, kind: input, shape index: {}]
  %s7 = inlined_call_operand.vmem [shape: f32[18,8], index: 7, kind: output, shape index: {}]
  %s8 = sld [smem:[#allocation0]]
  $region38: #{normal_mlp_forward.1} parent=0
    _
  %s10 = ssub.s32 1, %s8
  %s11 = scalar_select 0, %s10, %s8
  // Predicated region
  $region2: #{normal_mlp_forward.1} parent=0 // pred_check
    _
  $region3: #{normal_mlp_forward.1} parent=0 // pred_check_branch
    %13 = sbr.rel (0) target = $region5
  $region4: #{normal_mlp_forward.1} parent=0 // pred_region
    _
  $region5: #{normal_mlp_forward.1} parent=0 // pred_fallthru
    _
  // Predicated region
  $region6: #{normal_mlp_forward.1} parent=0 // pred_check
    _
  $region7: #{normal_mlp_forward.1} parent=0 // pred_check_branch
    %15 = sbr.rel (0) target = $region9
  $region8: #{normal_mlp_forward.1} parent=0 // pred_region
    _
  $region9: #{normal_mlp_forward.1} parent=0 // pred_fallthru
    _
  // Predicated region
  $region10: #{normal_mlp_forward.1} parent=0 // pred_check
    _
  $region11: #{normal_mlp_forward.1} parent=0 // pred_check_branch
    %17 = sbr.rel (0) target = $region13
  $region12: #{normal_mlp_forward.1} parent=0 // pred_region
    _
  $region13: #{normal_mlp_forward.1} parent=0 // pred_fallthru
    _
  // Predicated region
  $region14: #{normal_mlp_forward.1} parent=0 // pred_check
    _
  $region15: #{normal_mlp_forward.1} parent=0 // pred_check_branch
    %19 = sbr.rel (0) target = $region17
  $region16: #{normal_mlp_forward.1} parent=0 // pred_region
    _
  $region17: #{normal_mlp_forward.1} parent=0 // pred_fallthru
    _
  // Predicated region
  $region18: #{normal_mlp_forward.1} parent=0 // pred_check
    _
  $region19: #{normal_mlp_forward.1} parent=0 // pred_check_branch
    %21 = sbr.rel (0) target = $region21
  $region20: #{normal_mlp_forward.1} parent=0 // pred_region
    _
  $region21: #{normal_mlp_forward.1} parent=0 // pred_fallthru
    _
  // Predicated region
  $region22: #{normal_mlp_forward.1} parent=0 // pred_check
    _
  $region23: #{normal_mlp_forward.1} parent=0 // pred_check_branch
    %23 = sbr.rel (0) target = $region25
  $region24: #{normal_mlp_forward.1} parent=0 // pred_region
    _
  $region25: #{normal_mlp_forward.1} parent=0 // pred_fallthru
    _
  // Predicated region
  $region26: #{normal_mlp_forward.1} parent=0 // pred_check
    _
  $region27: #{normal_mlp_forward.1} parent=0 // pred_check_branch
    %25 = sbr.rel (0) target = $region29
  $region28: #{normal_mlp_forward.1} parent=0 // pred_region
    _
  $region29: #{normal_mlp_forward.1} parent=0 // pred_fallthru
    _
  %v26 = vld [vmem:[%s0] sm:$0x7f]
  %v27 = vld [vmem:[%s1] sm:$0xff]
  %v28 = vld [vmem:[%s1 + $0x8] sm:$0xff]
  %v29 = vld [vmem:[%s1 + $0x10] sm:$0xff]
  %v30 = vld [vmem:[%s1 + $0x18] sm:$0xff]
  %v31 = vld [vmem:[%s1 + $0x20] sm:$0xff]
  %v32 = vld [vmem:[%s1 + $0x28] sm:$0xff]
  %v33 = vld [vmem:[%s1 + $0x30] sm:$0xff]
  %v34 = vld [vmem:[%s1 + $0x38] sm:$0xff]
  %v35 = vld [vmem:[%s1 + $0x40] sm:$0xff]
  %v36 = vld [vmem:[%s1 + $0x48] sm:$0xff]
  %v37 = vld [vmem:[%s1 + $0x50] sm:$0xff]
  %v38 = vld [vmem:[%s1 + $0x58] sm:$0xff]
  %v39 = vld [vmem:[%s1 + $0x60] sm:$0xff]
  %v40 = vld [vmem:[%s1 + $0x68] sm:$0xff]
  %v41 = vld [vmem:[%s1 + $0x70] sm:$0xff]
  %v42 = vld [vmem:[%s1 + $0x78] sm:$0xff]
  %v43 = vld [vmem:[%s2] sm:$0xff]
  %v44 = vld [vmem:[%s2 + $0x8] sm:$0xff]
  %v45 = vld [vmem:[%s2 + $0x10] sm:$0xff]
  %v46 = vld [vmem:[%s2 + $0x18] sm:$0xff]
  %v47 = vld [vmem:[%s2 + $0x20] sm:$0xff]
  %v48 = vld [vmem:[%s2 + $0x28] sm:$0xff]
  %v49 = vld [vmem:[%s2 + $0x30] sm:$0xff]
  %v50 = vld [vmem:[%s2 + $0x38] sm:$0xff]
  %v51 = vld [vmem:[%s2 + $0x40] sm:$0xff]
  %v52 = vld [vmem:[%s2 + $0x48] sm:$0xff]
  %v53 = vld [vmem:[%s2 + $0x50] sm:$0xff]
  %v54 = vld [vmem:[%s2 + $0x58] sm:$0xff]
  %v55 = vld [vmem:[%s2 + $0x60] sm:$0xff]
  %v56 = vld [vmem:[%s2 + $0x68] sm:$0xff]
  %v57 = vld [vmem:[%s2 + $0x70] sm:$0xff]
  %v58 = vld [vmem:[%s2 + $0x78] sm:$0xff]
  %60 = vset.pattern.permute.xlu0 0
  %61 = vperm.xlu0 %60, %v43
  %v62 = vpop.permute.xlu0 %61
  %65 = vset.pattern.permute.xlu0 0
  %66 = vperm.xlu0 %65, %v44
  %v67 = vpop.permute.xlu0 %66
  %70 = vset.pattern.permute.xlu0 0
  %71 = vperm.xlu0 %70, %v45
  %v72 = vpop.permute.xlu0 %71
  %75 = vset.pattern.permute.xlu0 0
  %76 = vperm.xlu0 %75, %v46
  %v77 = vpop.permute.xlu0 %76
  %80 = vset.pattern.permute.xlu0 0
  %81 = vperm.xlu0 %80, %v47
  %v82 = vpop.permute.xlu0 %81
  %85 = vset.pattern.permute.xlu0 0
  %86 = vperm.xlu0 %85, %v48
  %v87 = vpop.permute.xlu0 %86
  %90 = vset.pattern.permute.xlu0 0
  %91 = vperm.xlu0 %90, %v49
  %v92 = vpop.permute.xlu0 %91
  %95 = vset.pattern.permute.xlu0 0
  %96 = vperm.xlu0 %95, %v50
  %v97 = vpop.permute.xlu0 %96
  %100 = vset.pattern.permute.xlu0 0
  %101 = vperm.xlu0 %100, %v51
  %v102 = vpop.permute.xlu0 %101
  %105 = vset.pattern.permute.xlu0 0
  %106 = vperm.xlu0 %105, %v52
  %v107 = vpop.permute.xlu0 %106
  %110 = vset.pattern.permute.xlu0 0
  %111 = vperm.xlu0 %110, %v53
  %v112 = vpop.permute.xlu0 %111
  %115 = vset.pattern.permute.xlu0 0
  %116 = vperm.xlu0 %115, %v54
  %v117 = vpop.permute.xlu0 %116
  %120 = vset.pattern.permute.xlu0 0
  %121 = vperm.xlu0 %120, %v55
  %v122 = vpop.permute.xlu0 %121
  %125 = vset.pattern.permute.xlu0 0
  %126 = vperm.xlu0 %125, %v56
  %v127 = vpop.permute.xlu0 %126
  %130 = vset.pattern.permute.xlu0 0
  %131 = vperm.xlu0 %130, %v57
  %v132 = vpop.permute.xlu0 %131
  %135 = vset.pattern.permute.xlu0 0
  %136 = vperm.xlu0 %135, %v58
  %v137 = vpop.permute.xlu0 %136
  %vm139 = vcmask 56320
  %v141 = vsel %vm139, %v27, 0
  %v144 = vsel %vm139, %v28, 0
  %v147 = vsel %vm139, %v29, 0
  %v150 = vsel %vm139, %v30, 0
  %v153 = vsel %vm139, %v31, 0
  %v156 = vsel %vm139, %v32, 0
  %v159 = vsel %vm139, %v33, 0
  %v162 = vsel %vm139, %v34, 0
  %v165 = vsel %vm139, %v35, 0
  %v168 = vsel %vm139, %v36, 0
  %v171 = vsel %vm139, %v37, 0
  %v174 = vsel %vm139, %v38, 0
  %v177 = vsel %vm139, %v39, 0
  %v180 = vsel %vm139, %v40, 0
  %v183 = vsel %vm139, %v41, 0
  %v186 = vsel %vm139, %v42, 0
  %vm188 = vcmask 1046528
  %v190 = vsel %vm188, %v26, 0
  %192 = vmatpush.msra.mxu0 0.0
  %193 = vmatpush.msra.mxu0 0.0
  %194 = vmatpush.msra.mxu0 0.0
  %195 = vmatpush.msra.mxu0 0.0
  %196 = vmatpush.msra.mxu0 0.0
  %197 = vmatpush.msra.mxu0 0.0
  %198 = vmatpush.msra.mxu0 0.0
  %199 = vmatpush.msra.mxu0 0.0
  %200 = vmatpush.msra.mxu0 0.0
  %201 = vmatpush.msra.mxu0 0.0
  %202 = vmatpush.msra.mxu0 0.0
  %203 = vmatpush.msra.mxu0 0.0
  %204 = vmatpush.msra.mxu0 0.0
  %205 = vmatpush.msra.mxu0 0.0
  %206 = vmatpush.msra.mxu0 0.0
  %207 = vmatpush.msra.mxu0 %v190
  %208 = vmatmul.f32.gmra.mxu0 %v141
  %v209 = vpop.f32.mrf.mxu0
  %v210 = vadd.f32 %v62, %v209
  %211 = vmatmul.f32.gmra.mxu0 %v144
  %v212 = vpop.f32.mrf.mxu0
  %v213 = vadd.f32 %v67, %v212
  %214 = vmatmul.f32.gmra.mxu0 %v147
  %v215 = vpop.f32.mrf.mxu0
  %v216 = vadd.f32 %v72, %v215
  %217 = vmatmul.f32.gmra.mxu0 %v150
  %v218 = vpop.f32.mrf.mxu0
  %v219 = vadd.f32 %v77, %v218
  %220 = vmatmul.f32.gmra.mxu0 %v153
  %v221 = vpop.f32.mrf.mxu0
  %v222 = vadd.f32 %v82, %v221
  %223 = vmatmul.f32.gmra.mxu0 %v156
  %v224 = vpop.f32.mrf.mxu0
  %v225 = vadd.f32 %v87, %v224
  %226 = vmatmul.f32.gmra.mxu0 %v159
  %v227 = vpop.f32.mrf.mxu0
  %v228 = vadd.f32 %v92, %v227
  %229 = vmatmul.f32.gmra.mxu0 %v162
  %v230 = vpop.f32.mrf.mxu0
  %v231 = vadd.f32 %v97, %v230
  %232 = vmatmul.f32.gmra.mxu0 %v165
  %v233 = vpop.f32.mrf.mxu0
  %v234 = vadd.f32 %v102, %v233
  %235 = vmatmul.f32.gmra.mxu0 %v168
  %v236 = vpop.f32.mrf.mxu0
  %v237 = vadd.f32 %v107, %v236
  %238 = vmatmul.f32.gmra.mxu0 %v171
  %v239 = vpop.f32.mrf.mxu0
  %v240 = vadd.f32 %v112, %v239
  %241 = vmatmul.f32.gmra.mxu0 %v174
  %v242 = vpop.f32.mrf.mxu0
  %v243 = vadd.f32 %v117, %v242
  %244 = vmatmul.f32.gmra.mxu0 %v177
  %v245 = vpop.f32.mrf.mxu0
  %v246 = vadd.f32 %v122, %v245
  %247 = vmatmul.f32.gmra.mxu0 %v180
  %v248 = vpop.f32.mrf.mxu0
  %v249 = vadd.f32 %v127, %v248
  %250 = vmatmul.f32.gmra.mxu0 %v183
  %v251 = vpop.f32.mrf.mxu0
  %v252 = vadd.f32 %v132, %v251
  %253 = vmatmul.f32.gmra.mxu0 %v186
  %v254 = vpop.f32.mrf.mxu0
  %v255 = vadd.f32 %v137, %v254
  %256 = vdwg.mxu0
  %v257 = vtanh.pop %v210
  %v258 = vtanh.pop %v213
  %v259 = vtanh.pop %v216
  %v260 = vtanh.pop %v219
  %v261 = vtanh.pop %v222
  %v262 = vtanh.pop %v225
  %v263 = vtanh.pop %v228
  %v264 = vtanh.pop %v231
  %v265 = vtanh.pop %v234
  %v266 = vtanh.pop %v237
  %v267 = vtanh.pop %v240
  %v268 = vtanh.pop %v243
  %v269 = vtanh.pop %v246
  %v270 = vtanh.pop %v249
  %v271 = vtanh.pop %v252
  %v272 = vtanh.pop %v255
  %v273 = vld [vmem:[%s3] sm:$0xff]
  %v274 = vld [vmem:[%s3 + $0x8] sm:$0xff]
  %v275 = vld [vmem:[%s3 + $0x10] sm:$0xff]
  %v276 = vld [vmem:[%s3 + $0x18] sm:$0xff]
  %v277 = vld [vmem:[%s3 + $0x20] sm:$0xff]
  %v278 = vld [vmem:[%s3 + $0x28] sm:$0xff]
  %v279 = vld [vmem:[%s3 + $0x30] sm:$0xff]
  %v280 = vld [vmem:[%s3 + $0x38] sm:$0xff]
  %v281 = vld [vmem:[%s3 + $0x40] sm:$0xff]
  %v282 = vld [vmem:[%s3 + $0x48] sm:$0xff]
  %v283 = vld [vmem:[%s3 + $0x50] sm:$0xff]
  %v284 = vld [vmem:[%s3 + $0x58] sm:$0xff]
  %v285 = vld [vmem:[%s3 + $0x60] sm:$0xff]
  %v286 = vld [vmem:[%s3 + $0x68] sm:$0xff]
  %v287 = vld [vmem:[%s3 + $0x70] sm:$0xff]
  %v288 = vld [vmem:[%s3 + $0x78] sm:$0xff]
  %v289 = vld [vmem:[%s4] sm:$0xff]
  %v290 = vld [vmem:[%s4 + $0x8] sm:$0xff]
  %v291 = vld [vmem:[%s4 + $0x10] sm:$0xff]
  %v292 = vld [vmem:[%s4 + $0x18] sm:$0xff]
  %v293 = vld [vmem:[%s4 + $0x20] sm:$0xff]
  %v294 = vld [vmem:[%s4 + $0x28] sm:$0xff]
  %v295 = vld [vmem:[%s4 + $0x30] sm:$0xff]
  %v296 = vld [vmem:[%s4 + $0x38] sm:$0xff]
  %v297 = vld [vmem:[%s4 + $0x40] sm:$0xff]
  %v298 = vld [vmem:[%s4 + $0x48] sm:$0xff]
  %v299 = vld [vmem:[%s4 + $0x50] sm:$0xff]
  %v300 = vld [vmem:[%s4 + $0x58] sm:$0xff]
  %v301 = vld [vmem:[%s4 + $0x60] sm:$0xff]
  %v302 = vld [vmem:[%s4 + $0x68] sm:$0xff]
  %v303 = vld [vmem:[%s4 + $0x70] sm:$0xff]
  %v304 = vld [vmem:[%s4 + $0x78] sm:$0xff]
  %306 = vset.pattern.permute.xlu0 0
  %307 = vperm.xlu0 %306, %v289
  %v308 = vpop.permute.xlu0 %307
  %311 = vset.pattern.permute.xlu0 0
  %312 = vperm.xlu0 %311, %v290
  %v313 = vpop.permute.xlu0 %312
  %316 = vset.pattern.permute.xlu0 0
  %317 = vperm.xlu0 %316, %v291
  %v318 = vpop.permute.xlu0 %317
  %321 = vset.pattern.permute.xlu0 0
  %322 = vperm.xlu0 %321, %v292
  %v323 = vpop.permute.xlu0 %322
  %326 = vset.pattern.permute.xlu0 0
  %327 = vperm.xlu0 %326, %v293
  %v328 = vpop.permute.xlu0 %327
  %331 = vset.pattern.permute.xlu0 0
  %332 = vperm.xlu0 %331, %v294
  %v333 = vpop.permute.xlu0 %332
  %336 = vset.pattern.permute.xlu0 0
  %337 = vperm.xlu0 %336, %v295
  %v338 = vpop.permute.xlu0 %337
  %341 = vset.pattern.permute.xlu0 0
  %342 = vperm.xlu0 %341, %v296
  %v343 = vpop.permute.xlu0 %342
  %346 = vset.pattern.permute.xlu0 0
  %347 = vperm.xlu0 %346, %v297
  %v348 = vpop.permute.xlu0 %347
  %351 = vset.pattern.permute.xlu0 0
  %352 = vperm.xlu0 %351, %v298
  %v353 = vpop.permute.xlu0 %352
  %356 = vset.pattern.permute.xlu0 0
  %357 = vperm.xlu0 %356, %v299
  %v358 = vpop.permute.xlu0 %357
  %361 = vset.pattern.permute.xlu0 0
  %362 = vperm.xlu0 %361, %v300
  %v363 = vpop.permute.xlu0 %362
  %366 = vset.pattern.permute.xlu0 0
  %367 = vperm.xlu0 %366, %v301
  %v368 = vpop.permute.xlu0 %367
  %371 = vset.pattern.permute.xlu0 0
  %372 = vperm.xlu0 %371, %v302
  %v373 = vpop.permute.xlu0 %372
  %376 = vset.pattern.permute.xlu0 0
  %377 = vperm.xlu0 %376, %v303
  %v378 = vpop.permute.xlu0 %377
  %381 = vset.pattern.permute.xlu0 0
  %382 = vperm.xlu0 %381, %v304
  %v383 = vpop.permute.xlu0 %382
  %385 = vmatpush.msra.mxu0 %v272
  %386 = vmatpush.msra.mxu0 %v271
  %387 = vmatpush.msra.mxu0 %v270
  %388 = vmatpush.msra.mxu0 %v269
  %389 = vmatpush.msra.mxu0 %v268
  %390 = vmatpush.msra.mxu0 %v267
  %391 = vmatpush.msra.mxu0 %v266
  %392 = vmatpush.msra.mxu0 %v265
  %393 = vmatpush.msra.mxu0 %v264
  %394 = vmatpush.msra.mxu0 %v263
  %395 = vmatpush.msra.mxu0 %v262
  %396 = vmatpush.msra.mxu0 %v261
  %397 = vmatpush.msra.mxu0 %v260
  %398 = vmatpush.msra.mxu0 %v259
  %399 = vmatpush.msra.mxu0 %v258
  %400 = vmatpush.msra.mxu0 %v257
  %401 = vmatmul.f32.gmra.mxu0 %v273
  %v402 = vpop.f32.mrf.mxu0
  %v403 = vadd.f32 %v308, %v402
  %404 = vmatmul.f32.gmra.mxu0 %v274
  %v405 = vpop.f32.mrf.mxu0
  %v406 = vadd.f32 %v313, %v405
  %407 = vmatmul.f32.gmra.mxu0 %v275
  %v408 = vpop.f32.mrf.mxu0
  %v409 = vadd.f32 %v318, %v408
  %410 = vmatmul.f32.gmra.mxu0 %v276
  %v411 = vpop.f32.mrf.mxu0
  %v412 = vadd.f32 %v323, %v411
  %413 = vmatmul.f32.gmra.mxu0 %v277
  %v414 = vpop.f32.mrf.mxu0
  %v415 = vadd.f32 %v328, %v414
  %416 = vmatmul.f32.gmra.mxu0 %v278
  %v417 = vpop.f32.mrf.mxu0
  %v418 = vadd.f32 %v333, %v417
  %419 = vmatmul.f32.gmra.mxu0 %v279
  %v420 = vpop.f32.mrf.mxu0
  %v421 = vadd.f32 %v338, %v420
  %422 = vmatmul.f32.gmra.mxu0 %v280
  %v423 = vpop.f32.mrf.mxu0
  %v424 = vadd.f32 %v343, %v423
  %425 = vmatmul.f32.gmra.mxu0 %v281
  %v426 = vpop.f32.mrf.mxu0
  %v427 = vadd.f32 %v348, %v426
  %428 = vmatmul.f32.gmra.mxu0 %v282
  %v429 = vpop.f32.mrf.mxu0
  %v430 = vadd.f32 %v353, %v429
  %431 = vmatmul.f32.gmra.mxu0 %v283
  %v432 = vpop.f32.mrf.mxu0
  %v433 = vadd.f32 %v358, %v432
  %434 = vmatmul.f32.gmra.mxu0 %v284
  %v435 = vpop.f32.mrf.mxu0
  %v436 = vadd.f32 %v363, %v435
  %437 = vmatmul.f32.gmra.mxu0 %v285
  %v438 = vpop.f32.mrf.mxu0
  %v439 = vadd.f32 %v368, %v438
  %440 = vmatmul.f32.gmra.mxu0 %v286
  %v441 = vpop.f32.mrf.mxu0
  %v442 = vadd.f32 %v373, %v441
  %443 = vmatmul.f32.gmra.mxu0 %v287
  %v444 = vpop.f32.mrf.mxu0
  %v445 = vadd.f32 %v378, %v444
  %446 = vmatmul.f32.gmra.mxu0 %v288
  %v447 = vpop.f32.mrf.mxu0
  %v448 = vadd.f32 %v383, %v447
  %449 = vdwg.mxu0
  %v450 = vtanh.pop %v403
  %v451 = vtanh.pop %v406
  %v452 = vtanh.pop %v409
  %v453 = vtanh.pop %v412
  %v454 = vtanh.pop %v415
  %v455 = vtanh.pop %v418
  %v456 = vtanh.pop %v421
  %v457 = vtanh.pop %v424
  %v458 = vtanh.pop %v427
  %v459 = vtanh.pop %v430
  %v460 = vtanh.pop %v433
  %v461 = vtanh.pop %v436
  %v462 = vtanh.pop %v439
  %v463 = vtanh.pop %v442
  %v464 = vtanh.pop %v445
  %v465 = vtanh.pop %v448
  %v466 = vld [vmem:[%s5] sm:$0xff]
  %v467 = vld [vmem:[%s5 + $0x8] sm:$0xff]
  %v468 = vld [vmem:[%s5 + $0x10] sm:$0x3]
  %v469 = vld [vmem:[%s6] sm:$0xff]
  %v470 = vld [vmem:[%s6 + $0x8] sm:$0xff]
  %v471 = vld [vmem:[%s6 + $0x10] sm:$0x3]
  %473 = vset.pattern.permute.xlu0 0
  %474 = vperm.xlu0 %473, %v469
  %v475 = vpop.permute.xlu0 %474
  %478 = vset.pattern.permute.xlu0 0
  %479 = vperm.xlu0 %478, %v470
  %v480 = vpop.permute.xlu0 %479
  %483 = vset.pattern.permute.xlu0 0
  %484 = vperm.xlu0 %483, %v471
  %v485 = vpop.permute.xlu0 %484
  %487 = vmatpush.msra.mxu0 %v465
  %488 = vmatpush.msra.mxu0 %v464
  %489 = vmatpush.msra.mxu0 %v463
  %490 = vmatpush.msra.mxu0 %v462
  %491 = vmatpush.msra.mxu0 %v461
  %492 = vmatpush.msra.mxu0 %v460
  %493 = vmatpush.msra.mxu0 %v459
  %494 = vmatpush.msra.mxu0 %v458
  %495 = vmatpush.msra.mxu0 %v457
  %496 = vmatpush.msra.mxu0 %v456
  %497 = vmatpush.msra.mxu0 %v455
  %498 = vmatpush.msra.mxu0 %v454
  %499 = vmatpush.msra.mxu0 %v453
  %500 = vmatpush.msra.mxu0 %v452
  %501 = vmatpush.msra.mxu0 %v451
  %502 = vmatpush.msra.mxu0 %v450
  %503 = vmatmul.f32.gmra.mxu0 %v466
  %v504 = vpop.f32.mrf.mxu0
  %v505 = vadd.f32 %v475, %v504
  %506 = vmatmul.f32.gmra.mxu0 %v467
  %v507 = vpop.f32.mrf.mxu0
  %v508 = vadd.f32 %v480, %v507
  %509 = vmatmul.f32.gmra.mxu0 %v468
  %v510 = vpop.f32.mrf.mxu0
  %v511 = vadd.f32 %v485, %v510
  %512 = vdwg.mxu0
  %513 = vst [vmem:[%s7] sm:$0xff] %v505
  %514 = vst [vmem:[%s7 + $0x8] sm:$0xff] %v508
  %515 = vst [vmem:[%s7 + $0x10] sm:$0x3] %v511
  // Predicated region
  $region30: #{normal_mlp_forward.1} parent=0 // pred_check
    _
  $region31: #{normal_mlp_forward.1} parent=0 // pred_check_branch
    %517 = sbr.rel (0) target = $region33
  $region32: #{normal_mlp_forward.1} parent=0 // pred_region
    _
  $region33: #{normal_mlp_forward.1} parent=0 // pred_fallthru
    _
  // Predicated region
  $region34: #{normal_mlp_forward.1} parent=0 // pred_check
    _
  $region35: #{normal_mlp_forward.1} parent=0 // pred_check_branch
    %519 = sbr.rel (0) target = $region37
  $region36: #{normal_mlp_forward.1} parent=0 // pred_region
    _
  $region37: #{normal_mlp_forward.1} parent=0 // pred_fallthru
    _

</llo_original>
